<compile_context>
chip_gen: v5e
topology: v5e:2x2
jax: 0.10.0
libtpu: 0.0.40
codegen_flags: <defaults>
</compile_context>

<pallas_src>
import functools

import jax
import jax.numpy as jnp
from jax.experimental import pallas as pl
from jax.experimental.pallas import tpu as pltpu

EPS = 1e-5
LANE = 128


def _round_up(x, m):
    return (x + m - 1) // m * m


def _pick_batch_tile(N, L, cinp, coutp, budget_bytes=4 << 20):
    """Largest divisor of N whose (x + h1 + y) tile stays under the budget."""
    per_sample = L * (cinp + 3 * coutp) * 4  # f32: x tile + im2col(h1) + y
    best = 1
    for d in range(1, N + 1):
        if N % d == 0 and d * per_sample <= budget_bytes:
            best = d
    return best


def _conv_block_kernel(x_ref, w1_ref, w2_ref, b_ref, y_ref, stats_ref):
    """Pass 1: conv1 -> ReLU -> conv2 -> ReLU, plus per-tile BN partial stats.

    x_ref    : (bn, L, Cinp)     input tile, channels last (lane-padded)
    w1_ref   : (3*Cinp, Coutp)   conv1 weights, 3 taps folded into K (im2col)
    w2_ref   : (3*Coutp, Coutp)  conv2 weights, 3 taps folded into K
    b_ref    : (2, Coutp)        rows = [bias1, bias2]
    y_ref    : (bn, L, Coutp)    conv2 + ReLU output tile
    stats_ref: (1, 2, Coutp)     rows = [sum_c, sum_sq_c] over this tile
    """
    bn, length, _ = x_ref.shape
    coutp = y_ref.shape[-1]

    def im2col(h):
        # h: (bn, L, C) -> (bn*L, 3*C); taps [l-1, l, l+1] with per-sample
        # replicate edges, concatenated along the lane (channel) axis so the
        # whole 3-tap conv becomes a single MXU contraction.
        left = jnp.concatenate([h[:, 0:1, :], h[:, :-1, :]], axis=1)
        right = jnp.concatenate([h[:, 1:, :], h[:, -1:, :]], axis=1)
        return jnp.concatenate([left, h, right], axis=2).reshape(
            bn * length, 3 * h.shape[-1])

    b1 = b_ref[0:1, :]
    b2 = b_ref[1:2, :]

    # conv1 (single matmul) + bias + ReLU; h1 stays in vregs (no scratch).
    h1 = jnp.dot(im2col(x_ref[...]), w1_ref[...],
                 preferred_element_type=jnp.float32) + b1
    h1 = jnp.maximum(h1, 0.0).reshape(bn, length, coutp)

    # conv2 (single matmul) + bias + ReLU.
    y = jnp.dot(im2col(h1), w2_ref[...],
                preferred_element_type=jnp.float32) + b2
    y = jnp.maximum(y, 0.0)                         # (bn*L, Coutp)

    y_ref[...] = y.reshape(bn, length, coutp)

    # BN partial stats computed while y is still live in vregs.
    s = jnp.sum(y, axis=0, keepdims=True)           # (1, Coutp)
    ss = jnp.sum(y * y, axis=0, keepdims=True)      # (1, Coutp)
    stats_ref[0] = jnp.concatenate([s, ss], axis=0)


def _bn_apply_kernel(y_ref, p_ref, o_ref):
    """Pass 2: out = y * scale + shift (global BN stats folded in)."""
    scale = p_ref[0:1, :].reshape(1, 1, -1)
    shift = p_ref[1:2, :].reshape(1, 1, -1)
    o_ref[...] = y_ref[...] * scale + shift


@functools.partial(jax.jit, static_argnames=("batch_tile",))
def block_forward(x_ncl, w1, b1, w2, b2, gamma, beta, *, batch_tile=None):
    """x_ncl: (N, Cin, L) float32, PyTorch NCL layout. Returns (N, Cout, L)."""
    N, Cin, L = x_ncl.shape
    Cout = w1.shape[-1]
    cinp = _round_up(Cin, LANE)
    coutp = _round_up(Cout, LANE)

    bn = batch_tile if batch_tile is not None else _pick_batch_tile(
        N, L, cinp, coutp)
    assert N % bn == 0, "batch_tile must divide N"
    n_tiles = N // bn

    # ---- glue: NCL -> NLC, lane-pad channels, fold taps into weight K dim ---
    x = jnp.transpose(x_ncl, (0, 2, 1))
    x = jnp.pad(x, ((0, 0), (0, 0), (0, cinp - Cin)))

    w1p = jnp.pad(w1, ((0, 0), (0, cinp - Cin), (0, coutp - Cout)))
    w1p = w1p.reshape(3 * cinp, coutp)
    w2p = jnp.pad(w2, ((0, 0), (0, coutp - Cout), (0, coutp - Cout)))
    w2p = w2p.reshape(3 * coutp, coutp)
    bias = jnp.concatenate(
        [jnp.pad(b1.reshape(1, Cout), ((0, 0), (0, coutp - Cout))),
         jnp.pad(b2.reshape(1, Cout), ((0, 0), (0, coutp - Cout)))], axis=0)

    # ---- pass 1: conv1 -> ReLU -> conv2 -> ReLU + per-tile BN stats ---------
    y, stats = pl.pallas_call(
        _conv_block_kernel,
        out_shape=(jax.ShapeDtypeStruct((N, L, coutp), jnp.float32),
                   jax.ShapeDtypeStruct((n_tiles, 2, coutp), jnp.float32)),
        grid=(n_tiles,),
        in_specs=[
            pl.BlockSpec((bn, L, cinp), lambda i: (i, 0, 0)),
            pl.BlockSpec((3 * cinp, coutp), lambda i: (0, 0)),
            pl.BlockSpec((3 * coutp, coutp), lambda i: (0, 0)),
            pl.BlockSpec((2, coutp), lambda i: (0, 0)),
        ],
        out_specs=(
            pl.BlockSpec((bn, L, coutp), lambda i: (i, 0, 0)),
            pl.BlockSpec((1, 2, coutp), lambda i: (i, 0, 0)),
        ),
        compiler_params=pltpu.CompilerParams(
            dimension_semantics=("parallel",)),
    )(x, w1p, w2p, bias)

    # ---- tiny global reduction + BN scale/shift fold (XLA, (2, Coutp)) ------
    total = jnp.sum(stats, axis=0)                        # (2, Coutp)
    cnt = jnp.float32(N * L)
    mean = total[0] / cnt
    var = jnp.maximum(total[1] / cnt - mean * mean, 0.0)  # biased variance
    gamma_p = jnp.pad(gamma.reshape(Cout), (0, coutp - Cout))
    beta_p = jnp.pad(beta.reshape(Cout), (0, coutp - Cout))
    scale = gamma_p * jax.lax.rsqrt(var + EPS)
    shift = beta_p - mean * scale
    bn_params = jnp.stack([scale, shift], axis=0)         # (2, Coutp)

    # ---- pass 2: apply BN (lane-dense FMA), in-place over y -----------------
    out = pl.pallas_call(
        _bn_apply_kernel,
        out_shape=jax.ShapeDtypeStruct((N, L, coutp), jnp.float32),
        grid=(n_tiles,),
        in_specs=[
            pl.BlockSpec((bn, L, coutp), lambda i: (i, 0, 0)),
            pl.BlockSpec((2, coutp), lambda i: (0, 0)),
        ],
        out_specs=pl.BlockSpec((bn, L, coutp), lambda i: (i, 0, 0)),
        input_output_aliases={0: 0},          # reuse y's HBM buffer for output
        compiler_params=pltpu.CompilerParams(
            dimension_semantics=("parallel",)),
    )(y, bn_params)

    out = out[:, :, :Cout]                 # drop lane padding
    return jnp.transpose(out, (0, 2, 1))   # back to NCL


def reference_forward(x_ncl, w1, b1, w2, b2, gamma, beta):
    """Plain-JAX reference mirroring PyTorch semantics (for validation)."""
    x = jnp.transpose(x_ncl, (0, 2, 1))             # (N, L, Cin)
    N, L, _ = x.shape
    Cout = w1.shape[-1]

    def conv(h, w, b):
        hp = jnp.pad(h, ((0, 0), (1, 1), (0, 0)), mode="edge")
        y = jnp.zeros((N, L, Cout), jnp.float32)
        for t in range(3):
            y = y + jnp.einsum("nlc,co->nlo", hp[:, t:t + L, :], w[t])
        return y + b.reshape(1, 1, Cout)

    h1 = jnp.maximum(conv(x, w1, b1), 0.0)
    y = jnp.maximum(conv(h1, w2, b2), 0.0)
    mean = jnp.mean(y, axis=(0, 1), keepdims=True)
    var = jnp.mean((y - mean) ** 2, axis=(0, 1), keepdims=True)
    out = (y - mean) / jnp.sqrt(var + EPS) * gamma.reshape(1, 1, Cout) \
          + beta.reshape(1, 1, Cout)
    return jnp.transpose(out, (0, 2, 1))


def init_params(key, in_ch, out_ch):
    """Deterministic init mimicking PyTorch Conv1d default (uniform +/- 1/sqrt(fan_in))."""
    k1, k2, k3, k4 = jax.random.split(key, 4)
    bound1 = 1.0 / jnp.sqrt(in_ch * 3.0)
    bound2 = 1.0 / jnp.sqrt(out_ch * 3.0)
    # stored tap-major, (tap, cin, cout)  == transpose of PyTorch (cout, cin, tap)
    w1 = jax.random.uniform(k1, (3, in_ch, out_ch), jnp.float32, -bound1, bound1)
    b1 = jax.random.uniform(k2, (1, out_ch), jnp.float32, -bound1, bound1)
    w2 = jax.random.uniform(k3, (3, out_ch, out_ch), jnp.float32, -bound2, bound2)
    b2 = jax.random.uniform(k4, (1, out_ch), jnp.float32, -bound2, bound2)
    gamma = jnp.ones((1, out_ch), jnp.float32)      # BN weight
    beta = jnp.zeros((1, out_ch), jnp.float32)      # BN bias
    return w1, b1, w2, b2, gamma, beta


if __name__ == "__main__":
    N, IN_CH, OUT_CH, L = 2, 4, 8, 16

    key = jax.random.PRNGKey(0)
    kx, kp = jax.random.split(key)
    x = jax.random.normal(kx, (N, IN_CH, L), jnp.float32)   # PyTorch NCL input
    params = init_params(kp, IN_CH, OUT_CH)

    out = block_forward(x, *params)
    out = jax.block_until_ready(out)
    assert out.shape == (N, OUT_CH, L)

    ref = reference_forward(x, *params)
    assert jnp.allclose(out, ref, atol=1e-4, rtol=1e-4), "mismatch vs reference"

    print("KERNEL_OK")
</pallas_src>

<mosaic_0001>
module attributes {stable_mosaic.version = 11 : i64} {
  func.func @_bn_apply_kernel(%arg0: i32, %arg1: memref<2x16x128xf32, #tpu.memory_space<vmem>>, %arg2: memref<2x128xf32, #tpu.memory_space<vmem>>, %arg3: memref<2x16x128xf32, #tpu.memory_space<vmem>>) attributes {dimension_semantics = [#tpu.dimension_semantics<parallel>], iteration_bounds = array<i64: 1>, scalar_prefetch = 0 : i64, scratch_operands = 0 : i64, tpu.core_type = #tpu.core_type<tc>, window_params = [{transform_indices = @transform_0, window_bounds = array<i64: 2, 16, 128>}, {pipeline_mode = #tpu.pipeline_mode<synchronous>, transform_indices = @transform_1, window_bounds = array<i64: 2, 128>}, {transform_indices = @transform_2, window_bounds = array<i64: 2, 16, 128>}]} {
    %c0 = arith.constant 0 : index
    %c0_0 = arith.constant 0 : index
    %0 = vector.load %arg2[%c0, %c0_0] : memref<2x128xf32, #tpu.memory_space<vmem>>, vector<1x128xf32>
    %1 = vector.shape_cast %0 : vector<1x128xf32> to vector<1x1x128xf32>
    %c1 = arith.constant 1 : index
    %c0_1 = arith.constant 0 : index
    %2 = vector.load %arg2[%c1, %c0_1] : memref<2x128xf32, #tpu.memory_space<vmem>>, vector<1x128xf32>
    %3 = vector.shape_cast %2 : vector<1x128xf32> to vector<1x1x128xf32>
    %c0_2 = arith.constant 0 : index
    %c0_3 = arith.constant 0 : index
    %c0_4 = arith.constant 0 : index
    %4 = vector.load %arg1[%c0_2, %c0_3, %c0_4] : memref<2x16x128xf32, #tpu.memory_space<vmem>>, vector<2x16x128xf32>
    %5 = vector.broadcast %1 : vector<1x1x128xf32> to vector<2x16x128xf32>
    %6 = arith.mulf %4, %5 : vector<2x16x128xf32>
    %7 = vector.broadcast %3 : vector<1x1x128xf32> to vector<2x16x128xf32>
    %8 = arith.addf %6, %7 : vector<2x16x128xf32>
    %c0_5 = arith.constant 0 : index
    %c0_6 = arith.constant 0 : index
    %c0_7 = arith.constant 0 : index
    %9 = vector.load %arg3[%c0_5, %c0_6, %c0_7] : memref<2x16x128xf32, #tpu.memory_space<vmem>>, vector<2x16x128xf32>
    tpu.vector_store %arg3[%c0_5, %c0_6, %c0_7], %8 {strides = array<i32>} : memref<2x16x128xf32, #tpu.memory_space<vmem>>, vector<2x16x128xf32>,
    return
  }
  func.func @transform_0(%arg0: i32) -> (i32, i32, i32) {
    %c0_i32 = arith.constant 0 : i32
    %c0_i32_0 = arith.constant 0 : i32
    %c0_i32_1 = arith.constant 0 : i32
    return %arg0, %c0_i32, %c0_i32_0 : i32, i32, i32
  }
  func.func @transform_1(%arg0: i32) -> (i32, i32) {
    %c0_i32 = arith.constant 0 : i32
    %c0_i32_0 = arith.constant 0 : i32
    %c0_i32_1 = arith.constant 0 : i32
    return %c0_i32, %c0_i32_0 : i32, i32
  }
  func.func @transform_2(%arg0: i32) -> (i32, i32, i32) {
    %c0_i32 = arith.constant 0 : i32
    %c0_i32_0 = arith.constant 0 : i32
    %c0_i32_1 = arith.constant 0 : i32
    return %arg0, %c0_i32, %c0_i32_0 : i32, i32, i32
  }
}

module attributes {stable_mosaic.version = 11 : i64} {
  func.func @_conv_block_kernel(%arg0: i32, %arg1: memref<2x16x128xf32, #tpu.memory_space<vmem>>, %arg2: memref<384x128xf32, #tpu.memory_space<vmem>>, %arg3: memref<384x128xf32, #tpu.memory_space<vmem>>, %arg4: memref<2x128xf32, #tpu.memory_space<vmem>>, %arg5: memref<2x16x128xf32, #tpu.memory_space<vmem>>, %arg6: memref<1x2x128xf32, #tpu.memory_space<vmem>>) attributes {dimension_semantics = [#tpu.dimension_semantics<parallel>], iteration_bounds = array<i64: 1>, scalar_prefetch = 0 : i64, scratch_operands = 0 : i64, tpu.core_type = #tpu.core_type<tc>, window_params = [{transform_indices = @transform_0, window_bounds = array<i64: 2, 16, 128>}, {pipeline_mode = #tpu.pipeline_mode<synchronous>, transform_indices = @transform_1, window_bounds = array<i64: 384, 128>}, {pipeline_mode = #tpu.pipeline_mode<synchronous>, transform_indices = @transform_2, window_bounds = array<i64: 384, 128>}, {pipeline_mode = #tpu.pipeline_mode<synchronous>, transform_indices = @transform_3, window_bounds = array<i64: 2, 128>}, {transform_indices = @transform_4, window_bounds = array<i64: 2, 16, 128>}, {transform_indices = @transform_5, window_bounds = array<i64: 1, 2, 128>}]} {
    %c0 = arith.constant 0 : index
    %c0_0 = arith.constant 0 : index
    %0 = vector.load %arg4[%c0, %c0_0] : memref<2x128xf32, #tpu.memory_space<vmem>>, vector<1x128xf32>
    %c1 = arith.constant 1 : index
    %c0_1 = arith.constant 0 : index
    %1 = vector.load %arg4[%c1, %c0_1] : memref<2x128xf32, #tpu.memory_space<vmem>>, vector<1x128xf32>
    %c0_2 = arith.constant 0 : index
    %c0_3 = arith.constant 0 : index
    %c0_4 = arith.constant 0 : index
    %2 = vector.load %arg1[%c0_2, %c0_3, %c0_4] : memref<2x16x128xf32, #tpu.memory_space<vmem>>, vector<2x16x128xf32>
    %3 = vector.extract_strided_slice %2 {offsets = [0, 0, 0], sizes = [2, 1, 128], strides = [1, 1, 1]} : vector<2x16x128xf32> to vector<2x1x128xf32>
    %4 = vector.extract_strided_slice %2 {offsets = [0, 0, 0], sizes = [2, 15, 128], strides = [1, 1, 1]} : vector<2x16x128xf32> to vector<2x15x128xf32>
    %5 = tpu.concatenate %3, %4 in 1 : vector<2x1x128xf32>, vector<2x15x128xf32> -> vector<2x16x128xf32>
    %6 = vector.extract_strided_slice %2 {offsets = [0, 1, 0], sizes = [2, 15, 128], strides = [1, 1, 1]} : vector<2x16x128xf32> to vector<2x15x128xf32>
    %7 = vector.extract_strided_slice %2 {offsets = [0, 15, 0], sizes = [2, 1, 128], strides = [1, 1, 1]} : vector<2x16x128xf32> to vector<2x1x128xf32>
    %8 = tpu.concatenate %6, %7 in 1 : vector<2x15x128xf32>, vector<2x1x128xf32> -> vector<2x16x128xf32>
    %9 = tpu.concatenate %5, %2, %8 in 2 : vector<2x16x128xf32>, vector<2x16x128xf32>, vector<2x16x128xf32> -> vector<2x16x384xf32>
    %10 = vector.shape_cast %9 : vector<2x16x384xf32> to vector<32x384xf32>
    %c0_5 = arith.constant 0 : index
    %c0_6 = arith.constant 0 : index
    %11 = vector.load %arg2[%c0_5, %c0_6] : memref<384x128xf32, #tpu.memory_space<vmem>>, vector<384x128xf32>
    %cst = arith.constant dense<0.000000e+00> : vector<32x128xf32>
    %12 = tpu.matmul %10, %11, %cst {dimension_numbers = #tpu.dot_dimension_numbers<[1], [0], [0], [1], [0, 0, 1, 1], [], []>} : vector<32x384xf32>, vector<384x128xf32>, vector<32x128xf32> -> vector<32x128xf32>
    %13 = vector.broadcast %0 : vector<1x128xf32> to vector<32x128xf32>
    %14 = arith.addf %12, %13 : vector<32x128xf32>
    %cst_7 = arith.constant 0.000000e+00 : f32
    %15 = vector.broadcast %cst_7 : f32 to vector<32x128xf32>
    %16 = arith.maximumf %14, %15 : vector<32x128xf32>
    %17 = vector.shape_cast %16 : vector<32x128xf32> to vector<2x16x128xf32>
    %18 = vector.extract_strided_slice %17 {offsets = [0, 0, 0], sizes = [2, 1, 128], strides = [1, 1, 1]} : vector<2x16x128xf32> to vector<2x1x128xf32>
    %19 = vector.extract_strided_slice %17 {offsets = [0, 0, 0], sizes = [2, 15, 128], strides = [1, 1, 1]} : vector<2x16x128xf32> to vector<2x15x128xf32>
    %20 = tpu.concatenate %18, %19 in 1 : vector<2x1x128xf32>, vector<2x15x128xf32> -> vector<2x16x128xf32>
    %21 = vector.extract_strided_slice %17 {offsets = [0, 1, 0], sizes = [2, 15, 128], strides = [1, 1, 1]} : vector<2x16x128xf32> to vector<2x15x128xf32>
    %22 = vector.extract_strided_slice %17 {offsets = [0, 15, 0], sizes = [2, 1, 128], strides = [1, 1, 1]} : vector<2x16x128xf32> to vector<2x1x128xf32>
    %23 = tpu.concatenate %21, %22 in 1 : vector<2x15x128xf32>, vector<2x1x128xf32> -> vector<2x16x128xf32>
    %24 = tpu.concatenate %20, %17, %23 in 2 : vector<2x16x128xf32>, vector<2x16x128xf32>, vector<2x16x128xf32> -> vector<2x16x384xf32>
    %25 = vector.shape_cast %24 : vector<2x16x384xf32> to vector<32x384xf32>
    %c0_8 = arith.constant 0 : index
    %c0_9 = arith.constant 0 : index
    %26 = vector.load %arg3[%c0_8, %c0_9] : memref<384x128xf32, #tpu.memory_space<vmem>>, vector<384x128xf32>
    %cst_10 = arith.constant dense<0.000000e+00> : vector<32x128xf32>
    %27 = tpu.matmul %25, %26, %cst_10 {dimension_numbers = #tpu.dot_dimension_numbers<[1], [0], [0], [1], [0, 0, 1, 1], [], []>} : vector<32x384xf32>, vector<384x128xf32>, vector<32x128xf32> -> vector<32x128xf32>
    %28 = vector.broadcast %1 : vector<1x128xf32> to vector<32x128xf32>
    %29 = arith.addf %27, %28 : vector<32x128xf32>
    %cst_11 = arith.constant 0.000000e+00 : f32
    %30 = vector.broadcast %cst_11 : f32 to vector<32x128xf32>
    %31 = arith.maximumf %29, %30 : vector<32x128xf32>
    %32 = vector.shape_cast %31 : vector<32x128xf32> to vector<2x16x128xf32>
    %c0_12 = arith.constant 0 : index
    %c0_13 = arith.constant 0 : index
    %c0_14 = arith.constant 0 : index
    %33 = vector.load %arg5[%c0_12, %c0_13, %c0_14] : memref<2x16x128xf32, #tpu.memory_space<vmem>>, vector<2x16x128xf32>
    tpu.vector_store %arg5[%c0_12, %c0_13, %c0_14], %32 {strides = array<i32>} : memref<2x16x128xf32, #tpu.memory_space<vmem>>, vector<2x16x128xf32>,
    %cst_15 = arith.constant dense<0.000000e+00> : vector<128xf32>
    %34 = vector.multi_reduction <add>, %31, %cst_15 [0] : vector<32x128xf32> to vector<128xf32>
    %35 = vector.shape_cast %34 : vector<128xf32> to vector<1x128xf32>
    %36 = arith.mulf %31, %31 : vector<32x128xf32>
    %cst_16 = arith.constant dense<0.000000e+00> : vector<128xf32>
    %37 = vector.multi_reduction <add>, %36, %cst_16 [0] : vector<32x128xf32> to vector<128xf32>
    %38 = vector.shape_cast %37 : vector<128xf32> to vector<1x128xf32>
    %39 = tpu.concatenate %35, %38 in 0 : vector<1x128xf32>, vector<1x128xf32> -> vector<2x128xf32>
    %c0_17 = arith.constant 0 : index
    %c0_18 = arith.constant 0 : index
    %c0_19 = arith.constant 0 : index
    %40 = vector.load %arg6[%c0_17, %c0_18, %c0_19] : memref<1x2x128xf32, #tpu.memory_space<vmem>>, vector<1x2x128xf32>
    %41 = vector.shape_cast %40 : vector<1x2x128xf32> to vector<2x128xf32>
    %42 = vector.shape_cast %39 : vector<2x128xf32> to vector<1x2x128xf32>
    tpu.vector_store %arg6[%c0_17, %c0_18, %c0_19], %42 {strides = array<i32>} : memref<1x2x128xf32, #tpu.memory_space<vmem>>, vector<1x2x128xf32>,
    return
  }
  func.func @transform_0(%arg0: i32) -> (i32, i32, i32) {
    %c0_i32 = arith.constant 0 : i32
    %c0_i32_0 = arith.constant 0 : i32
    %c0_i32_1 = arith.constant 0 : i32
    return %arg0, %c0_i32, %c0_i32_0 : i32, i32, i32
  }
  func.func @transform_1(%arg0: i32) -> (i32, i32) {
    %c0_i32 = arith.constant 0 : i32
    %c0_i32_0 = arith.constant 0 : i32
    %c0_i32_1 = arith.constant 0 : i32
    return %c0_i32, %c0_i32_0 : i32, i32
  }
  func.func @transform_2(%arg0: i32) -> (i32, i32) {
    %c0_i32 = arith.constant 0 : i32
    %c0_i32_0 = arith.constant 0 : i32
    %c0_i32_1 = arith.constant 0 : i32
    return %c0_i32, %c0_i32_0 : i32, i32
  }
  func.func @transform_3(%arg0: i32) -> (i32, i32) {
    %c0_i32 = arith.constant 0 : i32
    %c0_i32_0 = arith.constant 0 : i32
    %c0_i32_1 = arith.constant 0 : i32
    return %c0_i32, %c0_i32_0 : i32, i32
  }
  func.func @transform_4(%arg0: i32) -> (i32, i32, i32) {
    %c0_i32 = arith.constant 0 : i32
    %c0_i32_0 = arith.constant 0 : i32
    %c0_i32_1 = arith.constant 0 : i32
    return %arg0, %c0_i32, %c0_i32_0 : i32, i32, i32
  }
  func.func @transform_5(%arg0: i32) -> (i32, i32, i32) {
    %c0_i32 = arith.constant 0 : i32
    %c0_i32_0 = arith.constant 0 : i32
    %c0_i32_1 = arith.constant 0 : i32
    return %arg0, %c0_i32, %c0_i32_0 : i32, i32, i32
  }
}

</mosaic_0001>

<llo_original>
// kernel: block_forward.3
$region0: #{block_forward.3}
  #allocation0 [shape = 'u32[]', space=smem, size = 0x4, offset = 0x4, fixed_abs, tag = 'smem constant byte address 0x4 - core index']
  #allocation1 [shape = 'u32[72,128]{1,0:T(1,128)}', space=vmem, size = 0x9000, scoped, tag = 'internal scratch']
  %s0 = inlined_call_operand.vmem [shape: f32[2,16,128], index: 0, kind: input, shape index: {}, may-alias: {0,2}]
  %s1 = inlined_call_operand.vmem [shape: f32[2,128], index: 1, kind: input, shape index: {}]
  %s2 = inlined_call_operand.vmem [shape: f32[2,16,128], index: 2, kind: output, shape index: {}, may-alias: {0,2}]
  %s3 = sld [smem:[#allocation0]]
  $region18: #{block_forward.3} parent=0
    _
  %s5 = ssub.s32 1, %s3
  %s6 = scalar_select 0, %s5, %s3
  // Predicated region
  $region2: #{block_forward.3} parent=0 // pred_check
    _
  $region3: #{block_forward.3} parent=0 // pred_check_branch
    %8 = sbr.rel (0) target = $region5
  $region4: #{block_forward.3} parent=0 // pred_region
    _
  $region5: #{block_forward.3} parent=0 // pred_fallthru
    _
  // Predicated region
  $region6: #{block_forward.3} parent=0 // pred_check
    _
  $region7: #{block_forward.3} parent=0 // pred_check_branch
    %10 = sbr.rel (0) target = $region9
  $region8: #{block_forward.3} parent=0 // pred_region
    _
  $region9: #{block_forward.3} parent=0 // pred_fallthru
    _
  %v11 = vld [vmem:[%s1] sm:$0x1]
  %v12 = vld [vmem:[%s1 + $0x1] sm:$0x1]
  %v13 = vld [vmem:[%s0] sm:$0xff]
  %v14 = vld [vmem:[%s0 + $0x8] sm:$0xff]
  %v15 = vld [vmem:[%s0 + $0x10] sm:$0xff]
  %v16 = vld [vmem:[%s0 + $0x18] sm:$0xff]
  %v17 = vperm.slane %v11, 0
  %v18 = vmul.f32 %v13, %v17
  %v19 = vmul.f32 %v14, %v17
  %v20 = vmul.f32 %v15, %v17
  %v21 = vmul.f32 %v16, %v17
  %v22 = vperm.slane %v12, 0
  %v23 = vadd.f32 %v18, %v22
  %v24 = vadd.f32 %v19, %v22
  %v25 = vadd.f32 %v20, %v22
  %v26 = vadd.f32 %v21, %v22
  %27 = vst [vmem:[%s2] sm:$0xff] %v23
  %28 = vst [vmem:[%s2 + $0x8] sm:$0xff] %v24
  %29 = vst [vmem:[%s2 + $0x10] sm:$0xff] %v25
  %30 = vst [vmem:[%s2 + $0x18] sm:$0xff] %v26
  // Predicated region
  $region10: #{block_forward.3} parent=0 // pred_check
    _
  $region11: #{block_forward.3} parent=0 // pred_check_branch
    %32 = sbr.rel (0) target = $region13
  $region12: #{block_forward.3} parent=0 // pred_region
    _
  $region13: #{block_forward.3} parent=0 // pred_fallthru
    _
  // Predicated region
  $region14: #{block_forward.3} parent=0 // pred_check
    _
  $region15: #{block_forward.3} parent=0 // pred_check_branch
    %34 = sbr.rel (0) target = $region17
  $region16: #{block_forward.3} parent=0 // pred_region
    _
  $region17: #{block_forward.3} parent=0 // pred_fallthru
    _

// kernel: block_forward.2
$region0: #{block_forward.2}
  #allocation0 [shape = 'u32[]', space=smem, size = 0x4, offset = 0x4, fixed_abs, tag = 'smem constant byte address 0x4 - core index']
  #allocation1 [shape = 'u32[72,128]{1,0:T(1,128)}', space=vmem, size = 0x9000, scoped, tag = 'internal scratch']
  %s0 = inlined_call_operand.vmem [shape: f32[2,16,128], index: 0, kind: input, shape index: {}]
  %s1 = inlined_call_operand.vmem [shape: f32[384,128], index: 1, kind: input, shape index: {}]
  %s2 = inlined_call_operand.vmem [shape: f32[384,128], index: 2, kind: input, shape index: {}]
  %s3 = inlined_call_operand.vmem [shape: f32[2,128], index: 3, kind: input, shape index: {}]
  %s4 = inlined_call_operand.vmem [shape: f32[2,16,128], index: 4, kind: output, shape index: {0}]
  %s5 = inlined_call_operand.vmem [shape: f32[1,2,128], index: 5, kind: output, shape index: {1}]
  %6 = xla_tuple %s4, %s5
  %s7 = sld [smem:[#allocation0]]
  $region34: #{block_forward.2} parent=0
    _
  %s9 = ssub.s32 1, %s7
  %s10 = scalar_select 0, %s9, %s7
  // Predicated region
  $region2: #{block_forward.2} parent=0 // pred_check
    _
  $region3: #{block_forward.2} parent=0 // pred_check_branch
    %12 = sbr.rel (0) target = $region5
  $region4: #{block_forward.2} parent=0 // pred_region
    _
  $region5: #{block_forward.2} parent=0 // pred_fallthru
    _
  // Predicated region
  $region6: #{block_forward.2} parent=0 // pred_check
    _
  $region7: #{block_forward.2} parent=0 // pred_check_branch
    %14 = sbr.rel (0) target = $region9
  $region8: #{block_forward.2} parent=0 // pred_region
    _
  $region9: #{block_forward.2} parent=0 // pred_fallthru
    _
  // Predicated region
  $region10: #{block_forward.2} parent=0 // pred_check
    _
  $region11: #{block_forward.2} parent=0 // pred_check_branch
    %16 = sbr.rel (0) target = $region13
  $region12: #{block_forward.2} parent=0 // pred_region
    _
  $region13: #{block_forward.2} parent=0 // pred_fallthru
    _
  // Predicated region
  $region14: #{block_forward.2} parent=0 // pred_check
    _
  $region15: #{block_forward.2} parent=0 // pred_check_branch
    %18 = sbr.rel (0) target = $region17
  $region16: #{block_forward.2} parent=0 // pred_region
    _
  $region17: #{block_forward.2} parent=0 // pred_fallthru
    _
  %v19 = vld [vmem:[%s3] sm:$0x1]
  %v20 = vld [vmem:[%s3 + $0x1] sm:$0x1]
  %v21 = vld [vmem:[%s0] sm:$0xff]
  %v22 = vld [vmem:[%s0 + $0x8] sm:$0xff]
  %v23 = vld [vmem:[%s0 + $0x10] sm:$0xff]
  %v24 = vld [vmem:[%s0 + $0x18] sm:$0xff]
  %vm29 = vcmask 1040384
  %v30 = vrot.slane %v21, 7
  %v31 = vrot.slane %v22, 7
  %v32 = vsel %vm29, %v30, %v31
  %v33 = vrot.slane %v23, 7
  %v34 = vrot.slane %v24, 7
  %v35 = vsel %vm29, %v33, %v34
  %v40 = vsel %vm29, %v21, %v30
  %v41 = vsel %vm29, %v23, %v33
  %vm42 = vcmask 1046528
  %v43 = vrot.slane %v21, 1
  %v44 = vrot.slane %v22, 1
  %v45 = vsel %vm42, %v43, %v44
  %v46 = vrot.slane %v23, 1
  %v47 = vrot.slane %v24, 1
  %v48 = vsel %vm42, %v46, %v47
  %v53 = vsel %vm42, %v44, %v22
  %v54 = vsel %vm42, %v47, %v24
  %v55 = vld [vmem:[%s1] sm:$0xff]
  %v56 = vld [vmem:[%s1 + $0x8] sm:$0xff]
  %v57 = vld [vmem:[%s1 + $0x10] sm:$0xff]
  %v58 = vld [vmem:[%s1 + $0x18] sm:$0xff]
  %v59 = vld [vmem:[%s1 + $0x20] sm:$0xff]
  %v60 = vld [vmem:[%s1 + $0x28] sm:$0xff]
  %v61 = vld [vmem:[%s1 + $0x30] sm:$0xff]
  %v62 = vld [vmem:[%s1 + $0x38] sm:$0xff]
  %v63 = vld [vmem:[%s1 + $0x40] sm:$0xff]
  %v64 = vld [vmem:[%s1 + $0x48] sm:$0xff]
  %v65 = vld [vmem:[%s1 + $0x50] sm:$0xff]
  %v66 = vld [vmem:[%s1 + $0x58] sm:$0xff]
  %v67 = vld [vmem:[%s1 + $0x60] sm:$0xff]
  %v68 = vld [vmem:[%s1 + $0x68] sm:$0xff]
  %v69 = vld [vmem:[%s1 + $0x70] sm:$0xff]
  %v70 = vld [vmem:[%s1 + $0x78] sm:$0xff]
  %v71 = vld [vmem:[%s1 + $0x80] sm:$0xff]
  %v72 = vld [vmem:[%s1 + $0x88] sm:$0xff]
  %v73 = vld [vmem:[%s1 + $0x90] sm:$0xff]
  %v74 = vld [vmem:[%s1 + $0x98] sm:$0xff]
  %v75 = vld [vmem:[%s1 + $0xa0] sm:$0xff]
  %v76 = vld [vmem:[%s1 + $0xa8] sm:$0xff]
  %v77 = vld [vmem:[%s1 + $0xb0] sm:$0xff]
  %v78 = vld [vmem:[%s1 + $0xb8] sm:$0xff]
  %v79 = vld [vmem:[%s1 + $0xc0] sm:$0xff]
  %v80 = vld [vmem:[%s1 + $0xc8] sm:$0xff]
  %v81 = vld [vmem:[%s1 + $0xd0] sm:$0xff]
  %v82 = vld [vmem:[%s1 + $0xd8] sm:$0xff]
  %v83 = vld [vmem:[%s1 + $0xe0] sm:$0xff]
  %v84 = vld [vmem:[%s1 + $0xe8] sm:$0xff]
  %v85 = vld [vmem:[%s1 + $0xf0] sm:$0xff]
  %v86 = vld [vmem:[%s1 + $0xf8] sm:$0xff]
  %v87 = vld [vmem:[%s1 + $0x100] sm:$0xff]
  %v88 = vld [vmem:[%s1 + $0x108] sm:$0xff]
  %v89 = vld [vmem:[%s1 + $0x110] sm:$0xff]
  %v90 = vld [vmem:[%s1 + $0x118] sm:$0xff]
  %v91 = vld [vmem:[%s1 + $0x120] sm:$0xff]
  %v92 = vld [vmem:[%s1 + $0x128] sm:$0xff]
  %v93 = vld [vmem:[%s1 + $0x130] sm:$0xff]
  %v94 = vld [vmem:[%s1 + $0x138] sm:$0xff]
  %v95 = vld [vmem:[%s1 + $0x140] sm:$0xff]
  %v96 = vld [vmem:[%s1 + $0x148] sm:$0xff]
  %v97 = vld [vmem:[%s1 + $0x150] sm:$0xff]
  %v98 = vld [vmem:[%s1 + $0x158] sm:$0xff]
  %v99 = vld [vmem:[%s1 + $0x160] sm:$0xff]
  %v100 = vld [vmem:[%s1 + $0x168] sm:$0xff]
  %v101 = vld [vmem:[%s1 + $0x170] sm:$0xff]
  %v102 = vld [vmem:[%s1 + $0x178] sm:$0xff]
  %v103 = vperm.slane %v19, 0
  %104 = vmatpush.msra.mxu0 %v70
  %105 = vmatpush.msra.mxu0 %v69
  %106 = vmatpush.msra.mxu0 %v68
  %107 = vmatpush.msra.mxu0 %v67
  %108 = vmatpush.msra.mxu0 %v66
  %109 = vmatpush.msra.mxu0 %v65
  %110 = vmatpush.msra.mxu0 %v64
  %111 = vmatpush.msra.mxu0 %v63
  %112 = vmatpush.msra.mxu0 %v62
  %113 = vmatpush.msra.mxu0 %v61
  %114 = vmatpush.msra.mxu0 %v60
  %115 = vmatpush.msra.mxu0 %v59
  %116 = vmatpush.msra.mxu0 %v58
  %117 = vmatpush.msra.mxu0 %v57
  %118 = vmatpush.msra.mxu0 %v56
  %119 = vmatpush.msra.mxu0 %v55
  %120 = vmatmul.f32.gmra.mxu0 %v40
  %v121 = vpop.f32.mrf.mxu0
  %v122 = vadd.f32 %v103, %v121
  %123 = vmatmul.f32.gmra.mxu0 %v32
  %v124 = vpop.f32.mrf.mxu0
  %v125 = vadd.f32 %v103, %v124
  %126 = vmatmul.f32.gmra.mxu0 %v41
  %v127 = vpop.f32.mrf.mxu0
  %v128 = vadd.f32 %v103, %v127
  %129 = vmatmul.f32.gmra.mxu0 %v35
  %v130 = vpop.f32.mrf.mxu0
  %v131 = vadd.f32 %v103, %v130
  %132 = vdwg.mxu0
  %133 = vmatpush.msra.mxu0 %v86
  %134 = vmatpush.msra.mxu0 %v85
  %135 = vmatpush.msra.mxu0 %v84
  %136 = vmatpush.msra.mxu0 %v83
  %137 = vmatpush.msra.mxu0 %v82
  %138 = vmatpush.msra.mxu0 %v81
  %139 = vmatpush.msra.mxu0 %v80
  %140 = vmatpush.msra.mxu0 %v79
  %141 = vmatpush.msra.mxu0 %v78
  %142 = vmatpush.msra.mxu0 %v77
  %143 = vmatpush.msra.mxu0 %v76
  %144 = vmatpush.msra.mxu0 %v75
  %145 = vmatpush.msra.mxu0 %v74
  %146 = vmatpush.msra.mxu0 %v73
  %147 = vmatpush.msra.mxu0 %v72
  %148 = vmatpush.msra.mxu0 %v71
  %149 = vmatmul.f32.gmra.mxu0 %v21
  %v150 = vpop.f32.mrf.mxu0
  %v151 = vadd.f32 %v122, %v150
  %152 = vmatmul.f32.gmra.mxu0 %v22
  %v153 = vpop.f32.mrf.mxu0
  %v154 = vadd.f32 %v125, %v153
  %155 = vmatmul.f32.gmra.mxu0 %v23
  %v156 = vpop.f32.mrf.mxu0
  %v157 = vadd.f32 %v128, %v156
  %158 = vmatmul.f32.gmra.mxu0 %v24
  %v159 = vpop.f32.mrf.mxu0
  %v160 = vadd.f32 %v131, %v159
  %161 = vdwg.mxu0
  %162 = vmatpush.msra.mxu0 %v102
  %163 = vmatpush.msra.mxu0 %v101
  %164 = vmatpush.msra.mxu0 %v100
  %165 = vmatpush.msra.mxu0 %v99
  %166 = vmatpush.msra.mxu0 %v98
  %167 = vmatpush.msra.mxu0 %v97
  %168 = vmatpush.msra.mxu0 %v96
  %169 = vmatpush.msra.mxu0 %v95
  %170 = vmatpush.msra.mxu0 %v94
  %171 = vmatpush.msra.mxu0 %v93
  %172 = vmatpush.msra.mxu0 %v92
  %173 = vmatpush.msra.mxu0 %v91
  %174 = vmatpush.msra.mxu0 %v90
  %175 = vmatpush.msra.mxu0 %v89
  %176 = vmatpush.msra.mxu0 %v88
  %177 = vmatpush.msra.mxu0 %v87
  %178 = vmatmul.f32.gmra.mxu0 %v45
  %v179 = vpop.f32.mrf.mxu0
  %v180 = vadd.f32 %v151, %v179
  %181 = vmatmul.f32.gmra.mxu0 %v53
  %v182 = vpop.f32.mrf.mxu0
  %v183 = vadd.f32 %v154, %v182
  %184 = vmatmul.f32.gmra.mxu0 %v48
  %v185 = vpop.f32.mrf.mxu0
  %v186 = vadd.f32 %v157, %v185
  %187 = vmatmul.f32.gmra.mxu0 %v54
  %v188 = vpop.f32.mrf.mxu0
  %v189 = vadd.f32 %v160, %v188
  %190 = vdwg.mxu0
  %v191 = vmax.f32 %v180, 0.0
  %v192 = vmax.f32 %v183, 0.0
  %v193 = vmax.f32 %v186, 0.0
  %v194 = vmax.f32 %v189, 0.0
  %v199 = vrot.slane %v191, 7
  %v200 = vrot.slane %v192, 7
  %v201 = vsel %vm29, %v199, %v200
  %v202 = vrot.slane %v193, 7
  %v203 = vrot.slane %v194, 7
  %v204 = vsel %vm29, %v202, %v203
  %v209 = vsel %vm29, %v191, %v199
  %v210 = vsel %vm29, %v193, %v202
  %v211 = vrot.slane %v191, 1
  %v212 = vrot.slane %v192, 1
  %v213 = vsel %vm42, %v211, %v212
  %v214 = vrot.slane %v193, 1
  %v215 = vrot.slane %v194, 1
  %v216 = vsel %vm42, %v214, %v215
  %v221 = vsel %vm42, %v212, %v192
  %v222 = vsel %vm42, %v215, %v194
  %v223 = vld [vmem:[%s2] sm:$0xff]
  %v224 = vld [vmem:[%s2 + $0x8] sm:$0xff]
  %v225 = vld [vmem:[%s2 + $0x10] sm:$0xff]
  %v226 = vld [vmem:[%s2 + $0x18] sm:$0xff]
  %v227 = vld [vmem:[%s2 + $0x20] sm:$0xff]
  %v228 = vld [vmem:[%s2 + $0x28] sm:$0xff]
  %v229 = vld [vmem:[%s2 + $0x30] sm:$0xff]
  %v230 = vld [vmem:[%s2 + $0x38] sm:$0xff]
  %v231 = vld [vmem:[%s2 + $0x40] sm:$0xff]
  %v232 = vld [vmem:[%s2 + $0x48] sm:$0xff]
  %v233 = vld [vmem:[%s2 + $0x50] sm:$0xff]
  %v234 = vld [vmem:[%s2 + $0x58] sm:$0xff]
  %v235 = vld [vmem:[%s2 + $0x60] sm:$0xff]
  %v236 = vld [vmem:[%s2 + $0x68] sm:$0xff]
  %v237 = vld [vmem:[%s2 + $0x70] sm:$0xff]
  %v238 = vld [vmem:[%s2 + $0x78] sm:$0xff]
  %v239 = vld [vmem:[%s2 + $0x80] sm:$0xff]
  %v240 = vld [vmem:[%s2 + $0x88] sm:$0xff]
  %v241 = vld [vmem:[%s2 + $0x90] sm:$0xff]
  %v242 = vld [vmem:[%s2 + $0x98] sm:$0xff]
  %v243 = vld [vmem:[%s2 + $0xa0] sm:$0xff]
  %v244 = vld [vmem:[%s2 + $0xa8] sm:$0xff]
  %v245 = vld [vmem:[%s2 + $0xb0] sm:$0xff]
  %v246 = vld [vmem:[%s2 + $0xb8] sm:$0xff]
  %v247 = vld [vmem:[%s2 + $0xc0] sm:$0xff]
  %v248 = vld [vmem:[%s2 + $0xc8] sm:$0xff]
  %v249 = vld [vmem:[%s2 + $0xd0] sm:$0xff]
  %v250 = vld [vmem:[%s2 + $0xd8] sm:$0xff]
  %v251 = vld [vmem:[%s2 + $0xe0] sm:$0xff]
  %v252 = vld [vmem:[%s2 + $0xe8] sm:$0xff]
  %v253 = vld [vmem:[%s2 + $0xf0] sm:$0xff]
  %v254 = vld [vmem:[%s2 + $0xf8] sm:$0xff]
  %v255 = vld [vmem:[%s2 + $0x100] sm:$0xff]
  %v256 = vld [vmem:[%s2 + $0x108] sm:$0xff]
  %v257 = vld [vmem:[%s2 + $0x110] sm:$0xff]
  %v258 = vld [vmem:[%s2 + $0x118] sm:$0xff]
  %v259 = vld [vmem:[%s2 + $0x120] sm:$0xff]
  %v260 = vld [vmem:[%s2 + $0x128] sm:$0xff]
  %v261 = vld [vmem:[%s2 + $0x130] sm:$0xff]
  %v262 = vld [vmem:[%s2 + $0x138] sm:$0xff]
  %v263 = vld [vmem:[%s2 + $0x140] sm:$0xff]
  %v264 = vld [vmem:[%s2 + $0x148] sm:$0xff]
  %v265 = vld [vmem:[%s2 + $0x150] sm:$0xff]
  %v266 = vld [vmem:[%s2 + $0x158] sm:$0xff]
  %v267 = vld [vmem:[%s2 + $0x160] sm:$0xff]
  %v268 = vld [vmem:[%s2 + $0x168] sm:$0xff]
  %v269 = vld [vmem:[%s2 + $0x170] sm:$0xff]
  %v270 = vld [vmem:[%s2 + $0x178] sm:$0xff]
  %v271 = vperm.slane %v20, 0
  %272 = vmatpush.msra.mxu0 %v238
  %273 = vmatpush.msra.mxu0 %v237
  %274 = vmatpush.msra.mxu0 %v236
  %275 = vmatpush.msra.mxu0 %v235
  %276 = vmatpush.msra.mxu0 %v234
  %277 = vmatpush.msra.mxu0 %v233
  %278 = vmatpush.msra.mxu0 %v232
  %279 = vmatpush.msra.mxu0 %v231
  %280 = vmatpush.msra.mxu0 %v230
  %281 = vmatpush.msra.mxu0 %v229
  %282 = vmatpush.msra.mxu0 %v228
  %283 = vmatpush.msra.mxu0 %v227
  %284 = vmatpush.msra.mxu0 %v226
  %285 = vmatpush.msra.mxu0 %v225
  %286 = vmatpush.msra.mxu0 %v224
  %287 = vmatpush.msra.mxu0 %v223
  %288 = vmatmul.f32.gmra.mxu0 %v209
  %v289 = vpop.f32.mrf.mxu0
  %v290 = vadd.f32 %v271, %v289
  %291 = vmatmul.f32.gmra.mxu0 %v201
  %v292 = vpop.f32.mrf.mxu0
  %v293 = vadd.f32 %v271, %v292
  %294 = vmatmul.f32.gmra.mxu0 %v210
  %v295 = vpop.f32.mrf.mxu0
  %v296 = vadd.f32 %v271, %v295
  %297 = vmatmul.f32.gmra.mxu0 %v204
  %v298 = vpop.f32.mrf.mxu0
  %v299 = vadd.f32 %v271, %v298
  %300 = vdwg.mxu0
  %301 = vmatpush.msra.mxu0 %v254
  %302 = vmatpush.msra.mxu0 %v253
  %303 = vmatpush.msra.mxu0 %v252
  %304 = vmatpush.msra.mxu0 %v251
  %305 = vmatpush.msra.mxu0 %v250
  %306 = vmatpush.msra.mxu0 %v249
  %307 = vmatpush.msra.mxu0 %v248
  %308 = vmatpush.msra.mxu0 %v247
  %309 = vmatpush.msra.mxu0 %v246
  %310 = vmatpush.msra.mxu0 %v245
  %311 = vmatpush.msra.mxu0 %v244
  %312 = vmatpush.msra.mxu0 %v243
  %313 = vmatpush.msra.mxu0 %v242
  %314 = vmatpush.msra.mxu0 %v241
  %315 = vmatpush.msra.mxu0 %v240
  %316 = vmatpush.msra.mxu0 %v239
  %317 = vmatmul.f32.gmra.mxu0 %v191
  %v318 = vpop.f32.mrf.mxu0
  %v319 = vadd.f32 %v290, %v318
  %320 = vmatmul.f32.gmra.mxu0 %v192
  %v321 = vpop.f32.mrf.mxu0
  %v322 = vadd.f32 %v293, %v321
  %323 = vmatmul.f32.gmra.mxu0 %v193
  %v324 = vpop.f32.mrf.mxu0
  %v325 = vadd.f32 %v296, %v324
  %326 = vmatmul.f32.gmra.mxu0 %v194
  %v327 = vpop.f32.mrf.mxu0
  %v328 = vadd.f32 %v299, %v327
  %329 = vdwg.mxu0
  %330 = vmatpush.msra.mxu0 %v270
  %331 = vmatpush.msra.mxu0 %v269
  %332 = vmatpush.msra.mxu0 %v268
  %333 = vmatpush.msra.mxu0 %v267
  %334 = vmatpush.msra.mxu0 %v266
  %335 = vmatpush.msra.mxu0 %v265
  %336 = vmatpush.msra.mxu0 %v264
  %337 = vmatpush.msra.mxu0 %v263
  %338 = vmatpush.msra.mxu0 %v262
  %339 = vmatpush.msra.mxu0 %v261
  %340 = vmatpush.msra.mxu0 %v260
  %341 = vmatpush.msra.mxu0 %v259
  %342 = vmatpush.msra.mxu0 %v258
  %343 = vmatpush.msra.mxu0 %v257
  %344 = vmatpush.msra.mxu0 %v256
  %345 = vmatpush.msra.mxu0 %v255
  %346 = vmatmul.f32.gmra.mxu0 %v213
  %v347 = vpop.f32.mrf.mxu0
  %v348 = vadd.f32 %v319, %v347
  %349 = vmatmul.f32.gmra.mxu0 %v221
  %v350 = vpop.f32.mrf.mxu0
  %v351 = vadd.f32 %v322, %v350
  %352 = vmatmul.f32.gmra.mxu0 %v216
  %v353 = vpop.f32.mrf.mxu0
  %v354 = vadd.f32 %v325, %v353
  %355 = vmatmul.f32.gmra.mxu0 %v222
  %v356 = vpop.f32.mrf.mxu0
  %v357 = vadd.f32 %v328, %v356
  %358 = vdwg.mxu0
  %v359 = vmax.f32 %v348, 0.0
  %v360 = vmax.f32 %v351, 0.0
  %v361 = vmax.f32 %v354, 0.0
  %v362 = vmax.f32 %v357, 0.0
  %363 = vst [vmem:[%s4] sm:$0xff] %v359
  %364 = vst [vmem:[%s4 + $0x8] sm:$0xff] %v360
  %365 = vst [vmem:[%s4 + $0x10] sm:$0xff] %v361
  %366 = vst [vmem:[%s4 + $0x18] sm:$0xff] %v362
  %v367 = vadd.f32 %v359, %v360
  %v368 = vadd.f32 %v367, %v361
  %v369 = vadd.f32 %v368, %v362
  %v370 = vrot.slane %v369, 4
  %v371 = vadd.f32 %v369, %v370
  %v372 = vrot.slane %v371, 2
  %v373 = vadd.f32 %v371, %v372
  %v374 = vrot.slane %v373, 1
  %v375 = vadd.f32 %v373, %v374
  %v376 = vmul.f32 %v359, %v359
  %v377 = vmul.f32 %v360, %v360
  %v378 = vmul.f32 %v361, %v361
  %v379 = vmul.f32 %v362, %v362
  %v380 = vadd.f32 %v376, %v377
  %v381 = vadd.f32 %v380, %v378
  %v382 = vadd.f32 %v381, %v379
  %v383 = vrot.slane %v382, 4
  %v384 = vadd.f32 %v382, %v383
  %v385 = vrot.slane %v384, 2
  %v386 = vadd.f32 %v384, %v385
  %v387 = vrot.slane %v386, 1
  %v388 = vadd.f32 %v386, %v387
  %v389 = vsel %vm29, %v375, %v388
  %390 = vst [vmem:[%s5] sm:$0x3] %v389
  // Predicated region
  $region18: #{block_forward.2} parent=0 // pred_check
    _
  $region19: #{block_forward.2} parent=0 // pred_check_branch
    %392 = sbr.rel (0) target = $region21
  $region20: #{block_forward.2} parent=0 // pred_region
    _
  $region21: #{block_forward.2} parent=0 // pred_fallthru
    _
  // Predicated region
  $region22: #{block_forward.2} parent=0 // pred_check
    _
  $region23: #{block_forward.2} parent=0 // pred_check_branch
    %394 = sbr.rel (0) target = $region25
  $region24: #{block_forward.2} parent=0 // pred_region
    _
  $region25: #{block_forward.2} parent=0 // pred_fallthru
    _
  // Predicated region
  $region26: #{block_forward.2} parent=0 // pred_check
    _
  $region27: #{block_forward.2} parent=0 // pred_check_branch
    %396 = sbr.rel (0) target = $region29
  $region28: #{block_forward.2} parent=0 // pred_region
    _
  $region29: #{block_forward.2} parent=0 // pred_fallthru
    _
  // Predicated region
  $region30: #{block_forward.2} parent=0 // pred_check
    _
  $region31: #{block_forward.2} parent=0 // pred_check_branch
    %398 = sbr.rel (0) target = $region33
  $region32: #{block_forward.2} parent=0 // pred_region
    _
  $region33: #{block_forward.2} parent=0 // pred_fallthru
    _

</llo_original>
